<compile_context>
chip_gen: v5e
topology: v5e:2x2
jax: 0.10.0
libtpu: 0.0.40
codegen_flags: <defaults>
</compile_context>

<pallas_src>
import functools

import jax
import jax.numpy as jnp
from jax.experimental import pallas as pl
from jax.experimental.pallas import tpu as pltpu

_LANES = 128
# exp(30)^2 ~ 1.1e26 (far from f32 overflow); tanh(softplus(x)) == 1.0 in f32 for x >= ~10,
# so clamping the exp argument at 30 is bit-neutral while preventing overflow.
_SAFE_EXP_ARG = 30.0


def _mish_kernel_fused(x_ref, o_ref, *, threshold):
    """beta == 1 fast path: tanh(softplus(x)) = t / (t + 2), t = e*(e+2), e = exp(x)."""
    x = x_ref[...].astype(jnp.float32)
    above = x > threshold                      # torch.nn.Softplus reverts to identity here
    xs = jnp.minimum(x, _SAFE_EXP_ARG)         # keep e*(e+2) finite; exact (==1.0) for x >= 30
    e = jnp.exp(xs)
    t = e * (e + 2.0)
    tanh_sp = t * pl.reciprocal(t + 2.0)       # exact reciprocal: keeps 1e-5 tolerance vs reference
    # Above threshold (>= 10): reference is x*tanh(x), which equals x in f32 -> identity branch.
    y = jnp.where(above, x, x * tanh_sp)
    o_ref[...] = y.astype(o_ref.dtype)


def _mish_kernel_general(x_ref, o_ref, *, beta, threshold):
    """General path: arbitrary beta / threshold, matching torch.nn.Softplus semantics."""
    x = x_ref[...].astype(jnp.float32)
    inv_beta = 1.0 / beta                      # Python constant: no per-element divide
    bx = x * beta
    above = bx > threshold
    # Clamp so the unselected branch never overflows even for threshold > 80; log1p(exp(80)) == 80
    # in f32 and tanh saturates long before, so results are unaffected for any sane beta.
    bx_safe = jnp.minimum(bx, min(float(threshold), 80.0))
    sp = jnp.where(above, x, jnp.log1p(jnp.exp(bx_safe)) * inv_beta)
    y = x * jnp.tanh(sp)
    o_ref[...] = y.astype(o_ref.dtype)


def _mish_jnp(x, beta, threshold):
    """Plain-jnp Mish for the (<=127-element) unaligned tail; matches the kernel math."""
    xf = x.astype(jnp.float32)
    bx = xf * beta
    safe = jnp.minimum(bx, min(float(threshold), 80.0))
    sp = jnp.where(bx > threshold, xf, jnp.log1p(jnp.exp(safe)) / beta)
    return (xf * jnp.tanh(sp)).astype(x.dtype)


def _is_multi_tensorcore_chip() -> bool:
    """True for chips with more than one TensorCore per chip (v7x)."""
    try:
        kind = jax.devices()[0].device_kind.lower()
    except Exception:
        return False
    return "v7" in kind


def _vmem_capacity_bytes() -> int:
    """Per-core VMEM capacity; conservative fallback (v7x's 64 MiB) if the query fails."""
    try:
        return int(pltpu.get_tpu_info().vmem_capacity_bytes)
    except Exception:
        return 64 * 1024 * 1024


def _mish_2d(x2d, kernel, *, target_block_bytes):
    """Run the Mish kernel over a (rows, 128) lane-dense slab (rows may be any value)."""
    rows, lanes = x2d.shape
    assert lanes == _LANES
    dtype = x2d.dtype
    itemsize = jnp.dtype(dtype).itemsize
    packing = max(1, 4 // itemsize)            # elems per 32-bit word: f32->1, bf16->2, int8->4
    sublane = 8 * packing                      # native sublane tile: 8 / 16 / 32 rows
    lane_bytes = _LANES * itemsize

    # --- block sizing: ~target_block_bytes, capped by a VMEM budget accounting for the
    #     2x-buffered in+out blocks plus f32 compute temporaries (upcast for narrow dtypes).
    vmem_cap = _vmem_capacity_bytes()
    per_block_factor = 4 + 3 * packing         # 4 pipelined buffers + ~3 f32 temps per element
    max_block_bytes = max(sublane * lane_bytes, (vmem_cap // 2) // per_block_factor)
    block_bytes = min(target_block_bytes, max_block_bytes)

    row_tile = max(sublane, (block_bytes // lane_bytes) // sublane * sublane)
    row_tile = min(row_tile, pl.cdiv(rows, sublane) * sublane)

    # --- generation-aware grid splitting: only force extra steps where a second TensorCore
    #     and per-core pipelining can pay for the ~0.35us/step overhead.
    if _is_multi_tensorcore_chip():
        total_bytes = rows * lane_bytes
        if total_bytes >= 8 * (1 << 20):
            min_steps = 8                      # >= 4 pipelined steps per core on v7x
        elif total_bytes >= 1 * (1 << 20):
            min_steps = 2                      # at least use both TensorCores
        else:
            min_steps = 1
        if min_steps > 1:
            tile_for_steps = max(sublane, pl.cdiv(pl.cdiv(rows, min_steps), sublane) * sublane)
            row_tile = min(row_tile, tile_for_steps)

    grid = (pl.cdiv(rows, row_tile),)          # ragged last block handled by Pallas masking

    block_bytes_actual = row_tile * lane_bytes
    vmem_limit = int(min(vmem_cap,
                         max(32 * 1024 * 1024,
                             per_block_factor * block_bytes_actual + 4 * 1024 * 1024)))

    return pl.pallas_call(
        kernel,
        out_shape=jax.ShapeDtypeStruct((rows, _LANES), dtype),
        grid_spec=pltpu.PrefetchScalarGridSpec(
            num_scalar_prefetch=0,
            grid=grid,
            in_specs=[pl.BlockSpec((row_tile, _LANES), lambda i: (i, 0))],
            out_specs=pl.BlockSpec((row_tile, _LANES), lambda i: (i, 0)),
        ),
        compiler_params=pltpu.CompilerParams(
            # TODO(synk): profile on v7x and switch this axis to pltpu.CORE_PARALLEL if the
            # plain "parallel" axis does not actually shard across both TensorCores.
            dimension_semantics=("parallel",),
            vmem_limit_bytes=vmem_limit),
    )(x2d)


def mish(x,
         softplus_beta: float = 1.0,
         softplus_threshold: float = 20.0,
         target_block_bytes: int = 4 * 1024 * 1024):
    """Apply Mish elementwise. Any shape/dtype; flattens to a lane-dense (rows, 128) layout."""
    orig_shape = x.shape
    n = x.size
    if n == 0:
        return x

    beta = float(softplus_beta)
    threshold = float(softplus_threshold)
    if beta == 1.0 and threshold >= 10.0:
        kernel = functools.partial(_mish_kernel_fused, threshold=threshold)
    else:
        kernel = functools.partial(_mish_kernel_general, beta=beta, threshold=threshold)

    flat = x.reshape(-1)                       # contiguous: free reshape
    n_bulk = (n // _LANES) * _LANES

    if n_bulk == n:
        # Lane-aligned: no pad, no post-slice. rows may be any value; the ragged last
        # row-block is masked by Pallas.
        out2d = _mish_2d(flat.reshape(n // _LANES, _LANES), kernel,
                         target_block_bytes=target_block_bytes)
        return out2d.reshape(orig_shape)

    if n_bulk == 0:
        # Tiny input (< 128 elements): pad to a single lane row (negligible at this size).
        padded = jnp.pad(flat, (0, _LANES - n))
        out2d = _mish_2d(padded.reshape(1, _LANES), kernel,
                         target_block_bytes=target_block_bytes)
        return out2d.reshape(-1)[:n].reshape(orig_shape)

    # Unaligned: kernel on the aligned bulk; <=127-element tail as a tiny jnp epilogue.
    # Avoids the whole-array pad + post-slice HBM passes of the previous version.
    bulk = flat[:n_bulk].reshape(n_bulk // _LANES, _LANES)
    out_bulk = _mish_2d(bulk, kernel, target_block_bytes=target_block_bytes)
    out_tail = _mish_jnp(flat[n_bulk:], beta, threshold)
    return jnp.concatenate([out_bulk.reshape(-1), out_tail]).reshape(orig_shape)


def mish_reference(x, beta: float = 1.0, threshold: float = 20.0):
    xf = x.astype(jnp.float32)
    bx = beta * xf
    sp = jnp.where(bx > threshold, xf,
                   jnp.log1p(jnp.exp(jnp.minimum(bx, threshold))) / beta)
    return (xf * jnp.tanh(sp)).astype(x.dtype)


if __name__ == "__main__":
    key = jax.random.PRNGKey(0)
    k1, k2, k3, k4 = jax.random.split(key, 4)

    # 1) Typical NCHW activation, fused beta==1 path, lane-aligned (2048 elems -> 16 rows).
    x1 = jax.random.normal(k1, (2, 4, 16, 16), dtype=jnp.float32) * 5.0
    y1 = jax.block_until_ready(mish(x1))
    assert y1.shape == x1.shape and y1.dtype == x1.dtype
    assert jnp.allclose(y1, mish_reference(x1), atol=1e-5, rtol=1e-5), "fused/aligned mismatch"

    # 2) rows % 8 != 0 (1280 elems -> 10 rows): ragged last row-block, no padding passes.
    x2 = jax.random.normal(k2, (10, 128), dtype=jnp.float32) * 5.0
    y2 = jax.block_until_ready(mish(x2))
    assert jnp.allclose(y2, mish_reference(x2), atol=1e-5, rtol=1e-5), "ragged rows mismatch"

    # 3) General path (beta != 1), unaligned size with bulk + tail (5*53 = 265 = 2*128 + 9).
    x3 = jax.random.normal(k3, (5, 53), dtype=jnp.float32) * 4.0
    y3 = jax.block_until_ready(mish(x3, softplus_beta=1.5, softplus_threshold=15.0))
    assert y3.shape == x3.shape and y3.dtype == x3.dtype
    assert jnp.allclose(y3, mish_reference(x3, 1.5, 15.0), atol=1e-5, rtol=1e-5), \
        "general/bulk+tail mismatch"

    # 4) Tiny input (< 128 elements), fused path.
    x4 = jax.random.normal(k4, (3, 5, 7), dtype=jnp.float32) * 4.0
    y4 = jax.block_until_ready(mish(x4))
    assert y4.shape == x4.shape
    assert jnp.allclose(y4, mish_reference(x4), atol=1e-5, rtol=1e-5), "tiny-input mismatch"

    # 5) bf16 input (exercises the 16-row sublane packing path).
    x5 = x1.astype(jnp.bfloat16)
    y5 = jax.block_until_ready(mish(x5))
    assert y5.dtype == jnp.bfloat16 and y5.shape == x5.shape
    assert jnp.allclose(y5.astype(jnp.float32), mish_reference(x5).astype(jnp.float32),
                        atol=2e-2, rtol=2e-2), "bf16 mismatch"

    print("KERNEL_OK")
</pallas_src>

<mosaic_0001>
module attributes {stable_mosaic.version = 11 : i64} {
  func.func @_mish_kernel_fused(%arg0: i32, %arg1: memref<16x128xf32, #tpu.memory_space<vmem>>, %arg2: memref<16x128xf32, #tpu.memory_space<vmem>>) attributes {dimension_semantics = [#tpu.dimension_semantics<parallel>], iteration_bounds = array<i64: 1>, scalar_prefetch = 0 : i64, scratch_operands = 0 : i64, tpu.core_type = #tpu.core_type<tc>, window_params = [{transform_indices = @transform_0, window_bounds = array<i64: 16, 128>}, {transform_indices = @transform_1, window_bounds = array<i64: 16, 128>}]} {
    %c0 = arith.constant 0 : index
    %c0_0 = arith.constant 0 : index
    %0 = vector.load %arg1[%c0, %c0_0] : memref<16x128xf32, #tpu.memory_space<vmem>>, vector<16x128xf32>
    %cst = arith.constant 2.000000e+01 : f32
    %1 = vector.broadcast %cst : f32 to vector<16x128xf32>
    %2 = arith.cmpf ogt, %0, %1 : vector<16x128xf32>
    %cst_1 = arith.constant 3.000000e+01 : f32
    %3 = vector.broadcast %cst_1 : f32 to vector<16x128xf32>
    %4 = arith.minimumf %0, %3 : vector<16x128xf32>
    %5 = math.exp %4 : vector<16x128xf32>
    %cst_2 = arith.constant 2.000000e+00 : f32
    %6 = vector.broadcast %cst_2 : f32 to vector<16x128xf32>
    %7 = arith.addf %5, %6 : vector<16x128xf32>
    %8 = arith.mulf %5, %7 : vector<16x128xf32>
    %cst_3 = arith.constant 2.000000e+00 : f32
    %9 = vector.broadcast %cst_3 : f32 to vector<16x128xf32>
    %10 = arith.addf %8, %9 : vector<16x128xf32>
    %11 = tpu.reciprocal %10 : vector<16x128xf32> -> vector<16x128xf32>
    %12 = arith.mulf %8, %11 : vector<16x128xf32>
    %13 = arith.mulf %0, %12 : vector<16x128xf32>
    %14 = arith.select %2, %0, %13 : vector<16x128xi1>, vector<16x128xf32>
    %c0_4 = arith.constant 0 : index
    %c0_5 = arith.constant 0 : index
    %15 = vector.load %arg2[%c0_4, %c0_5] : memref<16x128xf32, #tpu.memory_space<vmem>>, vector<16x128xf32>
    tpu.vector_store %arg2[%c0_4, %c0_5], %14 {strides = array<i32>} : memref<16x128xf32, #tpu.memory_space<vmem>>, vector<16x128xf32>,
    return
  }
  func.func @transform_0(%arg0: i32) -> (i32, i32) {
    %c0_i32 = arith.constant 0 : i32
    %c0_i32_0 = arith.constant 0 : i32
    return %arg0, %c0_i32 : i32, i32
  }
  func.func @transform_1(%arg0: i32) -> (i32, i32) {
    %c0_i32 = arith.constant 0 : i32
    %c0_i32_0 = arith.constant 0 : i32
    return %arg0, %c0_i32 : i32, i32
  }
}

</mosaic_0001>

<llo_original>
// kernel: tpu_custom_call.1
$region0: #{tpu_custom_call.1}
  #allocation0 [shape = 'u32[]', space=smem, size = 0x4, offset = 0x4, fixed_abs, tag = 'smem constant byte address 0x4 - core index']
  #allocation1 [shape = 'u32[72,128]{1,0:T(1,128)}', space=vmem, size = 0x9000, scoped, tag = 'internal scratch']
  %s0 = inlined_call_operand.hbm [shape: f32[16,128], index: 0, kind: input, shape index: {}]
  %s1 = inlined_call_operand.hbm [shape: f32[16,128], index: 1, kind: output, shape index: {}]
  %s2 = sld [smem:[#allocation0]]
  $region18: #{tpu_custom_call.1} parent=0
    _
  %s4 = ssub.s32 1, %s2
  %s5 = scalar_select 0, %s4, %s2
  $region1: #{tpu_custom_call.1} parent=0
    #allocation2 [shape = 'u8[8192]{0}', space=vmem, size = 0x2000, scoped, tag = 'input window, operand 0, single buffered']
    #allocation3 [shape = 's32[1]{0}', space=sflag, size = 0x4, scoped, tag = 'scoped memory for tpu_custom_call.1']
    #allocation4 [shape = 's32[1]{0}', space=sflag, size = 0x4, scoped, tag = 'scoped memory for tpu_custom_call.1']
    #allocation5 [shape = 'u8[8192]{0}', space=vmem, size = 0x2000, scoped, tag = 'output window, operand 0, single buffered']
    %6 = vsyncpa [#allocation3], 0
    %7 = vsyncpa [#allocation4], 0
    // Predicated region
    $region2: #{tpu_custom_call.1} parent=1 // pred_check
      _
    $region3: #{tpu_custom_call.1} parent=1 // pred_check_branch
      %9 = sbr.rel (0) target = $region5
    $region4: #{tpu_custom_call.1} parent=1 // pred_region
      %11 = vsyncadd [#allocation3], 0
      %s12 = sshll.u32 %s0, 4
      %s13 = int_to_ptr.hbm [resolvable:$true] %s12
      %s14 = sshll.u32 [#allocation2], 4
      %s15 = int_to_ptr.vmem [resolvable:$true] %s14
      %20 = dma.hbm_to_vmem [thread:$0]  %s13, 256, %s15, [#allocation3], 128, 128, 8
    $region5: #{tpu_custom_call.1} parent=1 // pred_fallthru
      _
    // Predicated region
    $region6: #{tpu_custom_call.1} parent=1 // pred_check
      _
    $region7: #{tpu_custom_call.1} parent=1 // pred_check_branch
      %22 = sbr.rel (0) target = $region9
    $region8: #{tpu_custom_call.1} parent=1 // pred_region
      %24 = dma.done [#allocation3], 256
    $region9: #{tpu_custom_call.1} parent=1 // pred_fallthru
      _
    %v25 = vld [vmem:[#allocation2] sm:$0xff]
    %v26 = vld [vmem:[#allocation2 + $0x8] sm:$0xff]
    %vm27 = vcmp.gt.f32.partialorder %v25, 20.0
    %vm28 = vcmp.gt.f32.partialorder %v26, 20.0
    %v29 = vmin.f32 %v25, 30.0
    %v30 = vmin.f32 %v26, 30.0
    %v31 = vmul.f32 %v29, 1.442695
    %v32 = vpow.pop %v31
    %v33 = vmul.f32 %v30, 1.442695
    %v34 = vpow.pop %v33
    %v35 = vadd.f32 %v32, 2.0
    %v36 = vadd.f32 %v34, 2.0
    %v37 = vmul.f32 %v32, %v35
    %v38 = vmul.f32 %v34, %v36
    %v39 = vadd.f32 %v37, 2.0
    %v40 = vadd.f32 %v38, 2.0
    %v41 = vrcp.pop %v39
    %v42 = vmul.f32 %v39, %v41
    %v43 = vsub.f32 1.0, %v42
    %v44 = vmul.f32 %v41, %v43
    %v45 = vadd.f32 %v41, %v44
    %vm46 = vweird.f32 %v39
    %vm47 = vweird.f32 %v41
    %vm48 = vmor %vm46, %vm47
    %v49 = vsel %vm48, %v41, %v45
    %v50 = vand.u32 2147483647, %v39
    %vm51 = vcmp.eq.f32.partialorder %v50, 8.507059e+37
    %v52 = vand.u32 %v39, 2147483648
    %v53 = vor.u32 1.1754944e-38, %v52
    %v54 = vsel %vm51, %v53, %v49
    %v55 = vrcp.pop %v40
    %v56 = vmul.f32 %v40, %v55
    %v57 = vsub.f32 1.0, %v56
    %v58 = vmul.f32 %v55, %v57
    %v59 = vadd.f32 %v55, %v58
    %vm60 = vweird.f32 %v40
    %vm61 = vweird.f32 %v55
    %vm62 = vmor %vm60, %vm61
    %v63 = vsel %vm62, %v55, %v59
    %v64 = vand.u32 2147483647, %v40
    %vm65 = vcmp.eq.f32.partialorder %v64, 8.507059e+37
    %v66 = vand.u32 %v40, 2147483648
    %v67 = vor.u32 1.1754944e-38, %v66
    %v68 = vsel %vm65, %v67, %v63
    %v69 = vmul.f32 %v37, %v54
    %v70 = vmul.f32 %v38, %v68
    %v71 = vmul.f32 %v25, %v69
    %v72 = vmul.f32 %v26, %v70
    %v73 = vsel %vm27, %v25, %v71
    %v74 = vsel %vm28, %v26, %v72
    %75 = vst [vmem:[#allocation5] sm:$0xff] %v73
    %76 = vst [vmem:[#allocation5 + $0x8] sm:$0xff] %v74
    // Predicated region
    $region10: #{tpu_custom_call.1} parent=1 // pred_check
      _
    $region11: #{tpu_custom_call.1} parent=1 // pred_check_branch
      %78 = sbr.rel (0) target = $region13
    $region12: #{tpu_custom_call.1} parent=1 // pred_region
      %80 = vsyncadd [#allocation4], 0
      %s81 = sshll.u32 [#allocation5], 4
      %s82 = int_to_ptr.vmem [resolvable:$true] %s81
      %s83 = sshll.u32 %s1, 4
      %s84 = int_to_ptr.hbm [resolvable:$true] %s83
      %89 = dma.vmem_to_hbm [thread:$0]  %s82, 256, %s84, [#allocation4], 128, 128, 8
    $region13: #{tpu_custom_call.1} parent=1 // pred_fallthru
      _
    // Predicated region
    $region14: #{tpu_custom_call.1} parent=1 // pred_check
      _
    $region15: #{tpu_custom_call.1} parent=1 // pred_check_branch
      %91 = sbr.rel (0) target = $region17
    $region16: #{tpu_custom_call.1} parent=1 // pred_region
      %93 = dma.done [#allocation4], 256
    $region17: #{tpu_custom_call.1} parent=1 // pred_fallthru
      _
    %94 = vsyncpa [#allocation3], 1
    %95 = vsyncpa [#allocation4], 1

</llo_original>
